<compile_context>
chip_gen: v7x
topology: tpu7x:2x2x1
jax: 0.10.0
libtpu: 0.0.40
codegen_flags: <defaults>
</compile_context>

<pallas_src>
import math

import jax
import jax.numpy as jnp
from jax.experimental import pallas as pl
from jax.experimental.pallas import tpu as pltpu

_LANE = 128  # TPU lane width


def _copy_kernel(x_ref, o_ref):
    # Identity copy of one lane-dense VMEM tile.
    o_ref[...] = x_ref[...]


def _round_up(x, m):
    return ((x + m - 1) // m) * m


def _sublane_multiple(dtype):
    # Sublane tile height per dtype (f32: 8, bf16: 16, int8/fp8: 32).
    itemsize = jnp.dtype(dtype).itemsize
    return {4: 8, 2: 16, 1: 32}.get(itemsize, 8)


def _vmem_capacity_bytes():
    # Generation-aware VMEM capacity; conservative fallback = v7x per-TC 64 MiB.
    try:
        cap = int(getattr(pltpu.get_tpu_info(), "vmem_capacity_bytes"))
        if cap > 0:
            return cap
    except Exception:
        pass
    return 64 * 1024 * 1024


def _resolve_shape(shape, total):
    """Resolve a single -1 entry like torch.reshape does (static, host-side)."""
    shape = tuple(int(s) for s in shape)
    if -1 in shape:
        known = 1
        for s in shape:
            if s != -1:
                known *= s
        shape = tuple(total // known if s == -1 else s for s in shape)
    assert math.prod(shape) == total, "reshape size mismatch"
    return shape


def _pallas_copy_2d(slab):
    """Tiled, double-buffered identity copy of a lane-dense (rows, lanes) slab."""
    rows, lanes = slab.shape
    itemsize = jnp.dtype(slab.dtype).itemsize
    sub = _sublane_multiple(slab.dtype)

    vmem_cap = _vmem_capacity_bytes()
    # Keep (in + out) x double-buffer at <= ~1/4 of VMEM:
    #   128 MiB (v5e/v6e) -> 8 MiB / buffer;  64 MiB (v7x) -> 4 MiB / buffer.
    per_buf_bytes = vmem_cap // 16
    cap_rows = max(sub, (per_buf_bytes // (lanes * itemsize)) // sub * sub)

    if rows <= 8 * sub:
        # Tiny input: one full-extent block, no per-step overhead.
        block_rows = rows
    else:
        # Aim for >= ~8 grid steps (megacore sharding + pipelining on v7x),
        # capped by the VMEM-derived per-buffer budget; keep a sublane multiple.
        block_rows = min(cap_rows, _round_up(pl.cdiv(rows, 8), sub))
        block_rows = max(block_rows, sub)
        if block_rows >= rows:
            block_rows = rows

    grid = pl.cdiv(rows, block_rows)
    vmem_limit = min(vmem_cap // 2, 64 * 1024 * 1024)

    return pl.pallas_call(
        _copy_kernel,
        out_shape=jax.ShapeDtypeStruct((rows, lanes), slab.dtype),
        grid=(grid,),
        in_specs=[pl.BlockSpec((block_rows, lanes), lambda i: (i, 0))],
        out_specs=pl.BlockSpec((block_rows, lanes), lambda i: (i, 0)),
        compiler_params=pltpu.CompilerParams(
            dimension_semantics=("parallel",),  # shard grid over 2 TCs on v7x
            vmem_limit_bytes=vmem_limit,
        ),
        cost_estimate=pl.CostEstimate(
            flops=0, transcendentals=0,
            bytes_accessed=2 * rows * lanes * itemsize),
    )(slab)


def pallas_reshape(x, shape, *, materialize=False):
    """Equivalent of Reshape(shape).forward(x)."""
    n = int(x.size)
    target = _resolve_shape(shape, n)

    # Fast path (default): reshape of row-major contiguous data never requires
    # a copy, so return a metadata-only reshape (zero HBM traffic).
    if (not materialize) or n == 0 or n % _LANE != 0:
        # TODO(synk): the materialize + (n % 128 != 0) case also uses the
        # metadata path: padding + post-slice would add two full HBM passes
        # for a copy that is never semantically required.
        return x.reshape(target)

    # Explicitly-materialized copy through the Pallas kernel.
    flat = x.reshape(-1)
    lanes = 1024 if n % 1024 == 0 else _LANE
    slab = flat.reshape(n // lanes, lanes)
    out_slab = _pallas_copy_2d(slab)
    return out_slab.reshape(target)


class Reshape:
    """Mirror of the PyTorch module (no parameters)."""

    def __init__(self, shape, *, materialize=False):
        self.shape = shape
        self.materialize = materialize

    def __call__(self, x):
        # (PyTorch forward prints x.size(); omitted to keep stdout clean.)
        return pallas_reshape(x, self.shape, materialize=self.materialize)


if __name__ == "__main__":
    key = jax.random.PRNGKey(0)

    # Module-spec shapes: (2, 4, 16, 16) -> (2, 1024).  Default fast path.
    x = jax.random.normal(key, (2, 4, 16, 16), dtype=jnp.float32)
    ref = x.reshape(2, -1)
    y = jax.block_until_ready(Reshape((2, -1))(x))
    assert y.shape == (2, 1024) and y.dtype == x.dtype
    assert bool(jnp.array_equal(y, ref))

    # Materialized path: runs the Pallas copy kernel (1024-lane slab).
    y_k = jax.block_until_ready(Reshape((2, -1), materialize=True)(x))
    assert y_k.shape == (2, 1024) and y_k.dtype == x.dtype
    assert bool(jnp.array_equal(y_k, ref))

    # Multi-step pipelined grid through the kernel (rows=128 -> ~8 steps).
    x_big = jax.random.normal(jax.random.PRNGKey(0), (128, 1024), jnp.float32)
    y_big = jax.block_until_ready(Reshape((64, 2048), materialize=True)(x_big))
    assert bool(jnp.array_equal(y_big, x_big.reshape(64, 2048)))

    # 128-lane kernel branch (n % 1024 != 0, n % 128 == 0), bf16 dtype.
    x_bf = jax.random.normal(jax.random.PRNGKey(0), (8, 48)).astype(jnp.bfloat16)
    y_bf = jax.block_until_ready(Reshape((-1,), materialize=True)(x_bf))
    assert bool(jnp.array_equal(y_bf, x_bf.reshape(-1)))

    # Unaligned size: metadata fast path (no pad / post-slice HBM passes).
    x_odd = jax.random.normal(jax.random.PRNGKey(0), (3, 5, 7), jnp.float32)
    y_odd = jax.block_until_ready(Reshape((-1,))(x_odd))
    assert bool(jnp.array_equal(y_odd, x_odd.reshape(-1)))

    print("KERNEL_OK")
</pallas_src>

<mosaic_0001>
module attributes {stable_mosaic.version = 11 : i64} {
  func.func @_copy_kernel(%arg0: i32, %arg1: memref<2x1024xf32, #tpu.memory_space<vmem>>, %arg2: memref<2x1024xf32, #tpu.memory_space<vmem>>) attributes {dimension_semantics = [#tpu.dimension_semantics<parallel>], iteration_bounds = array<i64: 1>, scalar_prefetch = 0 : i64, scratch_operands = 0 : i64, tpu.core_type = #tpu.core_type<tc>, window_params = [{transform_indices = @transform_0, window_bounds = array<i64: 2, 1024>}, {transform_indices = @transform_1, window_bounds = array<i64: 2, 1024>}]} {
    %c0 = arith.constant 0 : index
    %c0_0 = arith.constant 0 : index
    %0 = vector.load %arg1[%c0, %c0_0] : memref<2x1024xf32, #tpu.memory_space<vmem>>, vector<2x1024xf32>
    %c0_1 = arith.constant 0 : index
    %c0_2 = arith.constant 0 : index
    %1 = vector.load %arg2[%c0_1, %c0_2] : memref<2x1024xf32, #tpu.memory_space<vmem>>, vector<2x1024xf32>
    tpu.vector_store %arg2[%c0_1, %c0_2], %0 {strides = array<i32>} : memref<2x1024xf32, #tpu.memory_space<vmem>>, vector<2x1024xf32>,
    return
  }
  func.func @transform_0(%arg0: i32) -> (i32, i32) {
    %c0_i32 = arith.constant 0 : i32
    %c0_i32_0 = arith.constant 0 : i32
    return %arg0, %c0_i32 : i32, i32
  }
  func.func @transform_1(%arg0: i32) -> (i32, i32) {
    %c0_i32 = arith.constant 0 : i32
    %c0_i32_0 = arith.constant 0 : i32
    return %arg0, %c0_i32 : i32, i32
  }
}

</mosaic_0001>

<llo_original>
// kernel: tpu_custom_call.1
$region0: #{tpu_custom_call.1}
  #allocation0 [shape = 'u32[]', space=smem, size = 0x4, offset = 0x4, fixed_abs, tag = 'smem constant byte address 0x4 - core index']
  #allocation1 [shape = 'u32[144,128]{1,0:T(1,128)}', space=vmem, size = 0x12000, scoped, tag = 'internal scratch']
  %s0 = inlined_call_operand.hbm [shape: f32[2,1024], index: 0, kind: input, shape index: {}]
  %s1 = inlined_call_operand.hbm [shape: f32[2,1024], index: 1, kind: output, shape index: {}]
  %s2 = sld [smem:[#allocation0]]
  $region18: #{tpu_custom_call.1} parent=0
    _
  %s4 = ssub.s32 1, %s2
  %s5 = scalar_select 0, %s4, %s2
  $region1: #{tpu_custom_call.1} parent=0
    #allocation2 [shape = 'u8[8192]{0}', space=vmem, size = 0x2000, scoped, tag = 'input window, operand 0, single buffered']
    #allocation3 [shape = 's32[1]{0}', space=sflag, size = 0x4, scoped, tag = 'scoped memory for tpu_custom_call.1']
    #allocation4 [shape = 's32[1]{0}', space=sflag, size = 0x4, scoped, tag = 'scoped memory for tpu_custom_call.1']
    #allocation5 [shape = 'u8[8192]{0}', space=vmem, size = 0x2000, scoped, tag = 'output window, operand 0, single buffered']
    %6 = vsyncpa [#allocation3], 0
    %7 = vsyncpa [#allocation4], 0
    // Predicated region
    $region2: #{tpu_custom_call.1} parent=1 // pred_check
      _
    $region3: #{tpu_custom_call.1} parent=1 // pred_check_branch
      %9 = sbr.rel (0) target = $region5
    $region4: #{tpu_custom_call.1} parent=1 // pred_region
      %s11 = ssub.s32 256, 256
      %12 = vsyncadd [#allocation3], %s11
      %s14 = sshll.u32 [#allocation2], 4
      %s15 = int_to_ptr.vmem [resolvable:$true] %s14
      %17 = dma.hbm_to_vmem [thread:$0]  %s0, 256, %s15, [#allocation3]
    $region5: #{tpu_custom_call.1} parent=1 // pred_fallthru
      _
    // Predicated region
    $region6: #{tpu_custom_call.1} parent=1 // pred_check
      _
    $region7: #{tpu_custom_call.1} parent=1 // pred_check_branch
      %19 = sbr.rel (0) target = $region9
    $region8: #{tpu_custom_call.1} parent=1 // pred_region
      %20 = dma.done [#allocation3], 256
    $region9: #{tpu_custom_call.1} parent=1 // pred_fallthru
      _
    %v21 = vld [vmem:[#allocation2] sm:$0xff]
    %v22 = vld [vmem:[#allocation2 + $0x8] sm:$0xff]
    %23 = vst [vmem:[#allocation5] sm:$0xff] %v21
    %24 = vst [vmem:[#allocation5 + $0x8] sm:$0xff] %v22
    // Predicated region
    $region10: #{tpu_custom_call.1} parent=1 // pred_check
      _
    $region11: #{tpu_custom_call.1} parent=1 // pred_check_branch
      %26 = sbr.rel (0) target = $region13
    $region12: #{tpu_custom_call.1} parent=1 // pred_region
      %s28 = ssub.s32 256, 256
      %29 = vsyncadd [#allocation4], %s28
      %s31 = sshll.u32 [#allocation5], 4
      %s32 = int_to_ptr.vmem [resolvable:$true] %s31
      %34 = dma.vmem_to_hbm [thread:$0]  %s32, 256, %s1, [#allocation4]
    $region13: #{tpu_custom_call.1} parent=1 // pred_fallthru
      _
    // Predicated region
    $region14: #{tpu_custom_call.1} parent=1 // pred_check
      _
    $region15: #{tpu_custom_call.1} parent=1 // pred_check_branch
      %36 = sbr.rel (0) target = $region17
    $region16: #{tpu_custom_call.1} parent=1 // pred_region
      %37 = dma.done [#allocation4], 256
    $region17: #{tpu_custom_call.1} parent=1 // pred_fallthru
      _
    %38 = vsyncpa [#allocation3], 1
    %39 = vsyncpa [#allocation4], 1

</llo_original>
